<compile_context>
chip_gen: v5e
topology: v5e:2x2
jax: 0.10.0
libtpu: 0.0.40
codegen_flags: <defaults>
</compile_context>

<pallas_src>
import jax
import jax.numpy as jnp
from jax import lax
from jax.experimental import pallas as pl
from jax.experimental.pallas import tpu as pltpu


# ----------------------------------------------------------------------------
# helpers
# ----------------------------------------------------------------------------
def _largest_divisor_chunk(n, target):
    c = min(n, target)
    while n % c:
        c -= 1
    return c


def _cparams(semantics):
    return pltpu.CompilerParams(dimension_semantics=semantics,
                                vmem_limit_bytes=48 * 1024 * 1024)


def _full_spec(shape):
    nd = len(shape)
    return pl.BlockSpec(shape, lambda i, _nd=nd: (0,) * _nd)


# ----------------------------------------------------------------------------
# Kernel 1: temporal Conv1d (k=3, padding=1) as a single stacked-tap matmul,
# tiled over T ("parallel").
#   xstk: (T, B, 3C)   w: (3C, C)   b: (1, C)   ->   y: (T, B, C)
# ----------------------------------------------------------------------------
def _conv_kernel(x_ref, w_ref, b_ref, y_ref):
    Tc, B, C = y_ref.shape
    K = x_ref.shape[-1]
    x = x_ref[...].reshape(Tc * B, K)
    y = jnp.dot(x, w_ref[...], preferred_element_type=jnp.float32) + b_ref[...]
    y_ref[...] = y.reshape(Tc, B, C).astype(y_ref.dtype)


def conv1d_same(x_tbc, w_stk, b, chunk=128):
    T, B, C = x_tbc.shape
    cdt = w_stk.dtype
    zero = jnp.zeros((1, B, C), x_tbc.dtype)
    xpad = jnp.concatenate([zero, x_tbc, zero], axis=0)            # (T+2, B, C)
    # taps stacked along the lane (contraction) axis -> one K=3C matmul
    xstk = jnp.concatenate([xpad[0:T], xpad[1:T + 1], xpad[2:T + 2]],
                           axis=-1).astype(cdt)                    # (T, B, 3C)
    Tc = _largest_divisor_chunk(T, chunk)
    n = T // Tc
    return pl.pallas_call(
        _conv_kernel,
        out_shape=jax.ShapeDtypeStruct((T, B, C), cdt),
        grid=(n,),
        in_specs=[pl.BlockSpec((Tc, B, 3 * C), lambda i: (i, 0, 0)),
                  _full_spec(w_stk.shape),
                  _full_spec(b.shape)],
        out_specs=pl.BlockSpec((Tc, B, C), lambda i: (i, 0, 0)),
        compiler_params=_cparams(("parallel",)),
    )(xstk, w_stk, b)


# ----------------------------------------------------------------------------
# Kernel 2: LSTM input projection for BOTH directions, hoisted out of the
# recurrence.  Gate layout along lanes: [i f g o]_fwd (4H) | [i f g o]_bwd (4H).
# ----------------------------------------------------------------------------
def _proj1_kernel(x_ref, w_ref, b_ref, gx_ref):
    Tc, B, D = x_ref.shape
    G = gx_ref.shape[-1]
    x = x_ref[...].reshape(Tc * B, D)
    y = jnp.dot(x, w_ref[...], preferred_element_type=jnp.float32) + b_ref[...]
    gx_ref[...] = y.reshape(Tc, B, G).astype(gx_ref.dtype)


def _proj2_kernel(xa_ref, xb_ref, wa_ref, wb_ref, b_ref, gx_ref):
    # input of deeper layers is [h_fwd | h_bwd]; the concat is folded into the
    # weight split so the two streams never need to be concatenated in HBM.
    Tc, B, H = xa_ref.shape
    G = gx_ref.shape[-1]
    xa = xa_ref[...].reshape(Tc * B, H)
    xb = xb_ref[...].reshape(Tc * B, H)
    y = (jnp.dot(xa, wa_ref[...], preferred_element_type=jnp.float32)
         + jnp.dot(xb, wb_ref[...], preferred_element_type=jnp.float32)
         + b_ref[...])
    gx_ref[...] = y.reshape(Tc, B, G).astype(gx_ref.dtype)


def input_projection_first(x, w_in, b_in, chunk=128):
    T, B, D = x.shape
    G = w_in.shape[1]
    Tc = _largest_divisor_chunk(T, chunk)
    n = T // Tc
    return pl.pallas_call(
        _proj1_kernel,
        out_shape=jax.ShapeDtypeStruct((T, B, G), w_in.dtype),
        grid=(n,),
        in_specs=[pl.BlockSpec((Tc, B, D), lambda i: (i, 0, 0)),
                  _full_spec(w_in.shape),
                  _full_spec(b_in.shape)],
        out_specs=pl.BlockSpec((Tc, B, G), lambda i: (i, 0, 0)),
        compiler_params=_cparams(("parallel",)),
    )(x, w_in, b_in)


def input_projection_deep(hf, hb, w_f, w_b, b_in, chunk=128):
    T, B, H = hf.shape
    G = w_f.shape[1]
    Tc = _largest_divisor_chunk(T, chunk)
    n = T // Tc
    return pl.pallas_call(
        _proj2_kernel,
        out_shape=jax.ShapeDtypeStruct((T, B, G), w_f.dtype),
        grid=(n,),
        in_specs=[pl.BlockSpec((Tc, B, H), lambda i: (i, 0, 0)),
                  pl.BlockSpec((Tc, B, H), lambda i: (i, 0, 0)),
                  _full_spec(w_f.shape),
                  _full_spec(w_b.shape),
                  _full_spec(b_in.shape)],
        out_specs=pl.BlockSpec((Tc, B, G), lambda i: (i, 0, 0)),
        compiler_params=_cparams(("parallel",)),
    )(hf, hb, w_f, w_b, b_in)


# ----------------------------------------------------------------------------
# Kernel 3: fused bidirectional LSTM recurrence, T-chunked ("arbitrary").
# Only h @ Whh remains on the serial path (gates from x are precomputed).
# Forward reads gx[:, :, :4H] chunk i; backward reads gx[:, :, 4H:] chunk
# (n-1-i) and iterates it in reverse.  (h,c) for both directions live in VMEM
# scratch across chunks.
# ----------------------------------------------------------------------------
def _bilstm_kernel(gxf_ref, gxb_ref, whhf_ref, whhb_ref, hf_ref, hb_ref,
                   state_ref):
    Tc, B, H = hf_ref.shape

    @pl.when(pl.program_id(0) == 0)
    def _init():
        state_ref[...] = jnp.zeros(state_ref.shape, state_ref.dtype)

    whhf = whhf_ref[...]
    whhb = whhb_ref[...]
    cdt = whhf.dtype

    def step(s, carry):
        h_f, h_b, c_f, c_b = carry
        rec_f = jnp.dot(h_f.astype(cdt), whhf, preferred_element_type=jnp.float32)
        rec_b = jnp.dot(h_b.astype(cdt), whhb, preferred_element_type=jnp.float32)
        gf = gxf_ref[s].astype(jnp.float32) + rec_f               # (B, 4H)
        gb = gxb_ref[Tc - 1 - s].astype(jnp.float32) + rec_b      # (B, 4H)
        i_f = jax.nn.sigmoid(gf[:, 0 * H:1 * H])
        f_f = jax.nn.sigmoid(gf[:, 1 * H:2 * H])
        g_f = jnp.tanh(gf[:, 2 * H:3 * H])
        o_f = jax.nn.sigmoid(gf[:, 3 * H:4 * H])
        i_b = jax.nn.sigmoid(gb[:, 0 * H:1 * H])
        f_b = jax.nn.sigmoid(gb[:, 1 * H:2 * H])
        g_b = jnp.tanh(gb[:, 2 * H:3 * H])
        o_b = jax.nn.sigmoid(gb[:, 3 * H:4 * H])
        c_f = f_f * c_f + i_f * g_f
        c_b = f_b * c_b + i_b * g_b
        h_f = o_f * jnp.tanh(c_f)
        h_b = o_b * jnp.tanh(c_b)
        hf_ref[s] = h_f.astype(hf_ref.dtype)
        hb_ref[Tc - 1 - s] = h_b.astype(hb_ref.dtype)
        return h_f, h_b, c_f, c_b

    init = (state_ref[0], state_ref[1], state_ref[2], state_ref[3])
    h_f, h_b, c_f, c_b = lax.fori_loop(0, Tc, step, init, unroll=True)
    state_ref[0] = h_f
    state_ref[1] = h_b
    state_ref[2] = c_f
    state_ref[3] = c_b


def bilstm_layer(gx, whhf, whhb, hidden, chunk=32):
    T, B, G = gx.shape
    H = hidden
    # NOTE: requires 4*hidden to be a multiple of 128 (true for hidden=32) so
    # the per-direction gate block is a clean lane block of gx.
    Tc = _largest_divisor_chunk(T, chunk)
    n = T // Tc
    return pl.pallas_call(
        _bilstm_kernel,
        out_shape=(jax.ShapeDtypeStruct((T, B, H), gx.dtype),
                   jax.ShapeDtypeStruct((T, B, H), gx.dtype)),
        grid=(n,),
        in_specs=[pl.BlockSpec((Tc, B, 4 * H), lambda i: (i, 0, 0)),
                  pl.BlockSpec((Tc, B, 4 * H), lambda i: (n - 1 - i, 0, 1)),
                  _full_spec(whhf.shape),
                  _full_spec(whhb.shape)],
        out_specs=(pl.BlockSpec((Tc, B, H), lambda i: (i, 0, 0)),
                   pl.BlockSpec((Tc, B, H), lambda i: (n - 1 - i, 0, 0))),
        scratch_shapes=[pltpu.VMEM((4, B, H), jnp.float32)],
        compiler_params=_cparams(("arbitrary",)),
    )(gx, gx, whhf, whhb)


# ----------------------------------------------------------------------------
# Kernel 4: streaming attention (online softmax over T) + context + Linear.
# Running max / denom / context kept in VMEM scratch; finalize on last chunk.
# ----------------------------------------------------------------------------
def _attn_fc_kernel(hf_ref, hb_ref, awf_ref, awb_ref, ab_ref,
                    fcwf_ref, fcwb_ref, fcb_ref, out_ref,
                    m_ref, l_ref, cf_ref, cb_ref):
    Tc, B, H = hf_ref.shape

    @pl.when(pl.program_id(0) == 0)
    def _init():
        m_ref[...] = jnp.full(m_ref.shape, -jnp.inf, m_ref.dtype)
        l_ref[...] = jnp.zeros(l_ref.shape, l_ref.dtype)
        cf_ref[...] = jnp.zeros(cf_ref.shape, cf_ref.dtype)
        cb_ref[...] = jnp.zeros(cb_ref.shape, cb_ref.dtype)

    hf = hf_ref[...]
    hb = hb_ref[...]
    hf2 = hf.reshape(Tc * B, H)
    hb2 = hb.reshape(Tc * B, H)
    # attention scores via the MXU (no cross-lane reduction)
    sc = (jnp.dot(hf2, awf_ref[...], preferred_element_type=jnp.float32)
          + jnp.dot(hb2, awb_ref[...], preferred_element_type=jnp.float32)
          + ab_ref[...])
    sc = sc.reshape(Tc, B, 1)

    m_old = m_ref[...]                                            # (1, B, 1)
    m_new = jnp.maximum(m_old, jnp.max(sc, axis=0, keepdims=True))
    alpha = jnp.exp(m_old - m_new)                                # (1, B, 1)
    p = jnp.exp(sc - m_new)                                       # (Tc, B, 1)
    l_ref[...] = alpha * l_ref[...] + jnp.sum(p, axis=0, keepdims=True)
    cf_ref[...] = alpha[0] * cf_ref[...] + jnp.sum(p * hf.astype(jnp.float32), axis=0)
    cb_ref[...] = alpha[0] * cb_ref[...] + jnp.sum(p * hb.astype(jnp.float32), axis=0)
    m_ref[...] = m_new

    @pl.when(pl.program_id(0) == pl.num_programs(0) - 1)
    def _finalize():
        inv = l_ref[0]                                            # (B, 1)
        ctx_f = cf_ref[...] / inv
        ctx_b = cb_ref[...] / inv
        cdt = fcwf_ref.dtype
        out = (jnp.dot(ctx_f.astype(cdt), fcwf_ref[...],
                       preferred_element_type=jnp.float32)
               + jnp.dot(ctx_b.astype(cdt), fcwb_ref[...],
                         preferred_element_type=jnp.float32)
               + fcb_ref[...])
        out_ref[...] = out


def attention_and_fc(hf, hb, awf, awb, ab, fcwf, fcwb, fcb, chunk=128):
    T, B, H = hf.shape
    NC = fcwf.shape[1]
    Tc = _largest_divisor_chunk(T, chunk)
    n = T // Tc
    return pl.pallas_call(
        _attn_fc_kernel,
        out_shape=jax.ShapeDtypeStruct((B, NC), jnp.float32),
        grid=(n,),
        in_specs=[pl.BlockSpec((Tc, B, H), lambda i: (i, 0, 0)),
                  pl.BlockSpec((Tc, B, H), lambda i: (i, 0, 0)),
                  _full_spec(awf.shape),
                  _full_spec(awb.shape),
                  _full_spec(ab.shape),
                  _full_spec(fcwf.shape),
                  _full_spec(fcwb.shape),
                  _full_spec(fcb.shape)],
        out_specs=pl.BlockSpec((B, NC), lambda i: (0, 0)),
        scratch_shapes=[pltpu.VMEM((1, B, 1), jnp.float32),
                        pltpu.VMEM((1, B, 1), jnp.float32),
                        pltpu.VMEM((B, H), jnp.float32),
                        pltpu.VMEM((B, H), jnp.float32)],
        compiler_params=_cparams(("arbitrary",)),
    )(hf, hb, awf, awb, ab, fcwf, fcwb, fcb)


# ----------------------------------------------------------------------------
# One-time parameter preparation: transpose / stack / split weights into the
# kernel-ready layout (and optionally cast matmul operands to bf16).
# ----------------------------------------------------------------------------
def prepare_params(params, hidden, num_layers, compute_dtype=jnp.float32):
    H = hidden
    cdt = compute_dtype
    conv_w = params["conv_w"]                                     # (C, C, 3)
    C = conv_w.shape[0]
    w_stk = jnp.concatenate([conv_w[:, :, k].T for k in range(3)], axis=0)
    prep = {
        "dtype": cdt,
        "conv_w": w_stk.astype(cdt),                              # (3C, C)
        "conv_b": params["conv_b"].reshape(1, C).astype(jnp.float32),
        "layers": [],
    }
    for layer in range(num_layers):
        p = params["lstm"][layer]
        w_in = jnp.concatenate([p["wih_f"].T, p["wih_b"].T], axis=1)   # (D, 8H)
        b_in = jnp.concatenate([p["bih_f"] + p["bhh_f"],
                                p["bih_b"] + p["bhh_b"]]).reshape(1, 8 * H)
        lp = {
            "b_in": b_in.astype(jnp.float32),
            "whhf": p["whh_f"].T.astype(cdt),                     # (H, 4H)
            "whhb": p["whh_b"].T.astype(cdt),                     # (H, 4H)
        }
        if layer == 0:
            lp["w_in"] = w_in.astype(cdt)                         # (C, 8H)
        else:
            lp["w_in_f"] = w_in[:H].astype(cdt)                   # (H, 8H)
            lp["w_in_b"] = w_in[H:].astype(cdt)                   # (H, 8H)
        prep["layers"].append(lp)
    aw = params["attn_w"].reshape(2 * H)
    prep["attn_wf"] = aw[:H].reshape(H, 1).astype(cdt)
    prep["attn_wb"] = aw[H:].reshape(H, 1).astype(cdt)
    prep["attn_b"] = params["attn_b"].reshape(1, 1).astype(jnp.float32)
    fcw = params["fc_w"].T                                        # (2H, NC)
    prep["fc_wf"] = fcw[:H].astype(cdt)
    prep["fc_wb"] = fcw[H:].astype(cdt)
    prep["fc_b"] = params["fc_b"].reshape(1, -1).astype(jnp.float32)
    return prep


# ----------------------------------------------------------------------------
# Full forward pass.
# ----------------------------------------------------------------------------
def action_recognition_lstm_forward(x_btc, prep, hidden, num_layers):
    # `lengths` of the PyTorch module is only used for a debug print -> omitted.
    B0, T, C = x_btc.shape
    Bp = ((B0 + 7) // 8) * 8            # pad batch to a multiple of 8 sublanes
    x = jnp.transpose(x_btc, (1, 0, 2)).astype(jnp.float32)      # (T, B0, C)
    if Bp != B0:
        x = jnp.concatenate([x, jnp.zeros((T, Bp - B0, C), x.dtype)], axis=1)

    y = conv1d_same(x, prep["conv_w"], prep["conv_b"])            # (T, Bp, C)

    hf = hb = None
    for layer in range(num_layers):
        lp = prep["layers"][layer]
        if layer == 0:
            gx = input_projection_first(y, lp["w_in"], lp["b_in"])
        else:
            gx = input_projection_deep(hf, hb, lp["w_in_f"], lp["w_in_b"],
                                       lp["b_in"])
        hf, hb = bilstm_layer(gx, lp["whhf"], lp["whhb"], hidden)

    out = attention_and_fc(hf, hb, prep["attn_wf"], prep["attn_wb"],
                           prep["attn_b"], prep["fc_wf"], prep["fc_wb"],
                           prep["fc_b"])                          # (Bp, NC)
    return out[:B0]


# ----------------------------------------------------------------------------
# Deterministic parameter init (PyTorch-style uniform bounds).
# ----------------------------------------------------------------------------
def init_params(key, input_size, hidden, num_classes, num_layers):
    def uni(k, shape, fan):
        bound = 1.0 / (fan ** 0.5)
        return jax.random.uniform(k, shape, jnp.float32, -bound, bound)

    keys = iter(jax.random.split(key, 64))
    params = {
        "conv_w": uni(next(keys), (input_size, input_size, 3), input_size * 3),
        "conv_b": uni(next(keys), (input_size,), input_size * 3),
        "attn_w": uni(next(keys), (1, 2 * hidden), 2 * hidden),
        "attn_b": uni(next(keys), (1,), 2 * hidden),
        "fc_w": uni(next(keys), (num_classes, 2 * hidden), 2 * hidden),
        "fc_b": uni(next(keys), (num_classes,), 2 * hidden),
        "lstm": [],
    }
    for layer in range(num_layers):
        D = input_size if layer == 0 else 2 * hidden
        lp = {}
        for d in ("f", "b"):
            lp["wih_" + d] = uni(next(keys), (4 * hidden, D), hidden)
            lp["whh_" + d] = uni(next(keys), (4 * hidden, hidden), hidden)
            lp["bih_" + d] = uni(next(keys), (4 * hidden,), hidden)
            lp["bhh_" + d] = uni(next(keys), (4 * hidden,), hidden)
        params["lstm"].append(lp)
    return params


# ----------------------------------------------------------------------------
# Pure-JAX reference (mirrors the PyTorch forward) for correctness checking.
# ----------------------------------------------------------------------------
def reference_forward(x_btc, params, hidden, num_layers):
    B, T, C = x_btc.shape
    xc = jnp.transpose(x_btc, (0, 2, 1))                          # (B, C, T)
    w, b = params["conv_w"], params["conv_b"]
    xpad = jnp.pad(xc, ((0, 0), (0, 0), (1, 1)))
    y = jnp.zeros((B, w.shape[0], T), jnp.float32)
    for k in range(3):
        y = y + jnp.einsum("bct,oc->bot", xpad[:, :, k:k + T], w[:, :, k])
    y = y + b[None, :, None]
    x = jnp.transpose(y, (0, 2, 1))                               # (B, T, C)

    def run_dir(seq, wih, whh, bih, bhh):
        H = hidden

        def step(carry, x_t):
            h, c = carry
            g = x_t @ wih.T + h @ whh.T + bih + bhh
            i = jax.nn.sigmoid(g[:, :H])
            f = jax.nn.sigmoid(g[:, H:2 * H])
            gg = jnp.tanh(g[:, 2 * H:3 * H])
            o = jax.nn.sigmoid(g[:, 3 * H:])
            c = f * c + i * gg
            h = o * jnp.tanh(c)
            return (h, c), h

        init = (jnp.zeros((B, H), jnp.float32), jnp.zeros((B, H), jnp.float32))
        _, hs = lax.scan(step, init, jnp.transpose(seq, (1, 0, 2)))
        return jnp.transpose(hs, (1, 0, 2))

    for layer in range(num_layers):
        p = params["lstm"][layer]
        hf = run_dir(x, p["wih_f"], p["whh_f"], p["bih_f"], p["bhh_f"])
        hb = jnp.flip(run_dir(jnp.flip(x, axis=1),
                              p["wih_b"], p["whh_b"], p["bih_b"], p["bhh_b"]),
                      axis=1)
        x = jnp.concatenate([hf, hb], axis=-1)                    # (B, T, 2H)

    scores = x @ params["attn_w"][0] + params["attn_b"][0]        # (B, T)
    attn = jax.nn.softmax(scores, axis=1)[..., None]
    context = jnp.sum(attn * x, axis=1)
    return context @ params["fc_w"].T + params["fc_b"]


if __name__ == "__main__":
    B, T = 2, 8
    input_size, hidden, num_classes, num_layers = 16, 32, 4, 2

    key = jax.random.PRNGKey(0)
    k_x, k_p = jax.random.split(key)
    x = jax.random.normal(k_x, (B, T, input_size), dtype=jnp.float32)
    params = init_params(k_p, input_size, hidden, num_classes, num_layers)

    ref = reference_forward(x, params, hidden, num_layers)

    # f32 path: tight numerical check against the reference.
    prep32 = prepare_params(params, hidden, num_layers, compute_dtype=jnp.float32)
    out32 = action_recognition_lstm_forward(x, prep32, hidden, num_layers)
    out32 = jax.block_until_ready(out32)
    assert out32.shape == (B, num_classes)
    assert jnp.allclose(out32, ref, atol=1e-4, rtol=1e-4)

    # bf16-MXU path (f32 accumulation / f32 recurrent state): loose check.
    prep16 = prepare_params(params, hidden, num_layers, compute_dtype=jnp.bfloat16)
    out16 = action_recognition_lstm_forward(x, prep16, hidden, num_layers)
    out16 = jax.block_until_ready(out16)
    assert out16.shape == (B, num_classes)
    assert bool(jnp.all(jnp.isfinite(out16)))
    assert jnp.allclose(out16, ref, atol=0.15, rtol=0.15)

    print("KERNEL_OK")
</pallas_src>

<mosaic_0001>
module attributes {stable_mosaic.version = 11 : i64} {
  func.func @_conv_kernel(%arg0: i32, %arg1: memref<8x8x48xf32, #tpu.memory_space<vmem>>, %arg2: memref<48x16xf32, #tpu.memory_space<vmem>>, %arg3: memref<1x16xf32, #tpu.memory_space<vmem>>, %arg4: memref<8x8x16xf32, #tpu.memory_space<vmem>>) attributes {dimension_semantics = [#tpu.dimension_semantics<parallel>], iteration_bounds = array<i64: 1>, scalar_prefetch = 0 : i64, scratch_operands = 0 : i64, tpu.core_type = #tpu.core_type<tc>, window_params = [{transform_indices = @transform_0, window_bounds = array<i64: 8, 8, 48>}, {pipeline_mode = #tpu.pipeline_mode<synchronous>, transform_indices = @transform_1, window_bounds = array<i64: 48, 16>}, {pipeline_mode = #tpu.pipeline_mode<synchronous>, transform_indices = @transform_2, window_bounds = array<i64: 1, 16>}, {transform_indices = @transform_3, window_bounds = array<i64: 8, 8, 16>}]} {
    %c0 = arith.constant 0 : index
    %c0_0 = arith.constant 0 : index
    %c0_1 = arith.constant 0 : index
    %0 = vector.load %arg1[%c0, %c0_0, %c0_1] : memref<8x8x48xf32, #tpu.memory_space<vmem>>, vector<8x8x48xf32>
    %1 = vector.shape_cast %0 : vector<8x8x48xf32> to vector<64x48xf32>
    %c0_2 = arith.constant 0 : index
    %c0_3 = arith.constant 0 : index
    %2 = vector.load %arg2[%c0_2, %c0_3] : memref<48x16xf32, #tpu.memory_space<vmem>>, vector<48x16xf32>
    %cst = arith.constant dense<0.000000e+00> : vector<64x16xf32>
    %3 = tpu.matmul %1, %2, %cst {dimension_numbers = #tpu.dot_dimension_numbers<[1], [0], [0], [1], [0, 0, 1, 1], [], []>} : vector<64x48xf32>, vector<48x16xf32>, vector<64x16xf32> -> vector<64x16xf32>
    %c0_4 = arith.constant 0 : index
    %c0_5 = arith.constant 0 : index
    %4 = vector.load %arg3[%c0_4, %c0_5] : memref<1x16xf32, #tpu.memory_space<vmem>>, vector<1x16xf32>
    %5 = vector.broadcast %4 : vector<1x16xf32> to vector<64x16xf32>
    %6 = arith.addf %3, %5 : vector<64x16xf32>
    %7 = vector.shape_cast %6 : vector<64x16xf32> to vector<8x8x16xf32>
    %c0_6 = arith.constant 0 : index
    %c0_7 = arith.constant 0 : index
    %c0_8 = arith.constant 0 : index
    %8 = vector.load %arg4[%c0_6, %c0_7, %c0_8] : memref<8x8x16xf32, #tpu.memory_space<vmem>>, vector<8x8x16xf32>
    tpu.vector_store %arg4[%c0_6, %c0_7, %c0_8], %7 {strides = array<i32>} : memref<8x8x16xf32, #tpu.memory_space<vmem>>, vector<8x8x16xf32>,
    return
  }
  func.func @transform_0(%arg0: i32) -> (i32, i32, i32) {
    %c0_i32 = arith.constant 0 : i32
    %c0_i32_0 = arith.constant 0 : i32
    %c0_i32_1 = arith.constant 0 : i32
    return %arg0, %c0_i32, %c0_i32_0 : i32, i32, i32
  }
  func.func @transform_1(%arg0: i32) -> (i32, i32) {
    %c0_i32 = arith.constant 0 : i32
    %c0_i32_0 = arith.constant 0 : i32
    %c0_i32_1 = arith.constant 0 : i32
    return %c0_i32, %c0_i32_0 : i32, i32
  }
  func.func @transform_2(%arg0: i32) -> (i32, i32) {
    %c0_i32 = arith.constant 0 : i32
    %c0_i32_0 = arith.constant 0 : i32
    %c0_i32_1 = arith.constant 0 : i32
    return %c0_i32, %c0_i32_0 : i32, i32
  }
  func.func @transform_3(%arg0: i32) -> (i32, i32, i32) {
    %c0_i32 = arith.constant 0 : i32
    %c0_i32_0 = arith.constant 0 : i32
    %c0_i32_1 = arith.constant 0 : i32
    return %arg0, %c0_i32, %c0_i32_0 : i32, i32, i32
  }
}

</mosaic_0001>

<llo_original>
// kernel: tpu_custom_call.1
$region0: #{tpu_custom_call.1}
  #allocation0 [shape = 'u32[]', space=smem, size = 0x4, offset = 0x4, fixed_abs, tag = 'smem constant byte address 0x4 - core index']
  #allocation1 [shape = 'u32[72,128]{1,0:T(1,128)}', space=vmem, size = 0x9000, scoped, tag = 'internal scratch']
  %s0 = inlined_call_operand.vmem [shape: f32[8,8,48], index: 0, kind: input, shape index: {}]
  %s1 = inlined_call_operand.vmem [shape: f32[48,16], index: 1, kind: input, shape index: {}]
  %s2 = inlined_call_operand.vmem [shape: f32[1,16], index: 2, kind: input, shape index: {}]
  %s3 = inlined_call_operand.hbm [shape: f32[8,8,16], index: 3, kind: output, shape index: {}]
  %s4 = sld [smem:[#allocation0]]
  $region22: #{tpu_custom_call.1} parent=0
    _
  %s6 = ssub.s32 1, %s4
  %s7 = scalar_select 0, %s6, %s4
  $region1: #{tpu_custom_call.1} parent=0
    #allocation2 [shape = 'u8[32768]{0}', space=vmem, size = 0x8000, scoped, tag = 'output window, operand 0, single buffered']
    #allocation3 [shape = 's32[1]{0}', space=sflag, size = 0x4, scoped, tag = 'scoped memory for tpu_custom_call.1']
    %8 = vsyncpa [#allocation3], 0
    // Predicated region
    $region2: #{tpu_custom_call.1} parent=1 // pred_check
      _
    $region3: #{tpu_custom_call.1} parent=1 // pred_check_branch
      %10 = sbr.rel (0) target = $region5
    $region4: #{tpu_custom_call.1} parent=1 // pred_region
      _
    $region5: #{tpu_custom_call.1} parent=1 // pred_fallthru
      _
    // Predicated region
    $region6: #{tpu_custom_call.1} parent=1 // pred_check
      _
    $region7: #{tpu_custom_call.1} parent=1 // pred_check_branch
      %12 = sbr.rel (0) target = $region9
    $region8: #{tpu_custom_call.1} parent=1 // pred_region
      _
    $region9: #{tpu_custom_call.1} parent=1 // pred_fallthru
      _
    // Predicated region
    $region10: #{tpu_custom_call.1} parent=1 // pred_check
      _
    $region11: #{tpu_custom_call.1} parent=1 // pred_check_branch
      %14 = sbr.rel (0) target = $region13
    $region12: #{tpu_custom_call.1} parent=1 // pred_region
      _
    $region13: #{tpu_custom_call.1} parent=1 // pred_fallthru
      _
    %v15 = vld [vmem:[%s0] sm:$0xff]
    %v16 = vld [vmem:[%s0 + $0x8] sm:$0xff]
    %v17 = vld [vmem:[%s0 + $0x10] sm:$0xff]
    %v18 = vld [vmem:[%s0 + $0x18] sm:$0xff]
    %v19 = vld [vmem:[%s0 + $0x20] sm:$0xff]
    %v20 = vld [vmem:[%s0 + $0x28] sm:$0xff]
    %v21 = vld [vmem:[%s0 + $0x30] sm:$0xff]
    %v22 = vld [vmem:[%s0 + $0x38] sm:$0xff]
    %v23 = vld [vmem:[%s1] sm:$0xff]
    %v24 = vld [vmem:[%s1 + $0x8] sm:$0xff]
    %v25 = vld [vmem:[%s1 + $0x10] sm:$0xff]
    %v26 = vld [vmem:[%s1 + $0x18] sm:$0xff]
    %v27 = vld [vmem:[%s1 + $0x20] sm:$0xff]
    %v28 = vld [vmem:[%s1 + $0x28] sm:$0xff]
    %v29 = vld [vmem:[%s2] sm:$0x1]
    %v31 = vperm.slane %v29, 0
    %vm33 = vcmask 392192
    %v35 = vsel %vm33, %v15, 0
    %v38 = vsel %vm33, %v16, 0
    %v41 = vsel %vm33, %v17, 0
    %v44 = vsel %vm33, %v18, 0
    %v47 = vsel %vm33, %v19, 0
    %v50 = vsel %vm33, %v20, 0
    %v53 = vsel %vm33, %v21, 0
    %v56 = vsel %vm33, %v22, 0
    %58 = vmatpush.msra.mxu0 0.0
    %59 = vmatpush.msra.mxu0 0.0
    %60 = vmatpush.msra.mxu0 0.0
    %61 = vmatpush.msra.mxu0 0.0
    %62 = vmatpush.msra.mxu0 0.0
    %63 = vmatpush.msra.mxu0 0.0
    %64 = vmatpush.msra.mxu0 0.0
    %65 = vmatpush.msra.mxu0 0.0
    %66 = vmatpush.msra.mxu0 0.0
    %67 = vmatpush.msra.mxu0 0.0
    %68 = vmatpush.msra.mxu0 %v28
    %69 = vmatpush.msra.mxu0 %v27
    %70 = vmatpush.msra.mxu0 %v26
    %71 = vmatpush.msra.mxu0 %v25
    %72 = vmatpush.msra.mxu0 %v24
    %73 = vmatpush.msra.mxu0 %v23
    %74 = vmatmul.f32.gmra.mxu0 %v35
    %v75 = vpop.f32.mrf.mxu0
    %v76 = vadd.f32 %v31, %v75
    %77 = vmatmul.f32.gmra.mxu0 %v38
    %v78 = vpop.f32.mrf.mxu0
    %v79 = vadd.f32 %v31, %v78
    %80 = vmatmul.f32.gmra.mxu0 %v41
    %v81 = vpop.f32.mrf.mxu0
    %v82 = vadd.f32 %v31, %v81
    %83 = vmatmul.f32.gmra.mxu0 %v44
    %v84 = vpop.f32.mrf.mxu0
    %v85 = vadd.f32 %v31, %v84
    %86 = vmatmul.f32.gmra.mxu0 %v47
    %v87 = vpop.f32.mrf.mxu0
    %v88 = vadd.f32 %v31, %v87
    %89 = vmatmul.f32.gmra.mxu0 %v50
    %v90 = vpop.f32.mrf.mxu0
    %v91 = vadd.f32 %v31, %v90
    %92 = vmatmul.f32.gmra.mxu0 %v53
    %v93 = vpop.f32.mrf.mxu0
    %v94 = vadd.f32 %v31, %v93
    %95 = vmatmul.f32.gmra.mxu0 %v56
    %v96 = vpop.f32.mrf.mxu0
    %v97 = vadd.f32 %v31, %v96
    %98 = vdwg.mxu0
    %vm99 = vcmask 130048
    %100 = vst.msk [vmem:[#allocation2] sm:$0xff] %vm99, %v76
    %101 = vst.msk [vmem:[#allocation2 + $0x8] sm:$0xff] %vm99, %v79
    %102 = vst.msk [vmem:[#allocation2 + $0x10] sm:$0xff] %vm99, %v82
    %103 = vst.msk [vmem:[#allocation2 + $0x18] sm:$0xff] %vm99, %v85
    %104 = vst.msk [vmem:[#allocation2 + $0x20] sm:$0xff] %vm99, %v88
    %105 = vst.msk [vmem:[#allocation2 + $0x28] sm:$0xff] %vm99, %v91
    %106 = vst.msk [vmem:[#allocation2 + $0x30] sm:$0xff] %vm99, %v94
    %107 = vst.msk [vmem:[#allocation2 + $0x38] sm:$0xff] %vm99, %v97
    // Predicated region
    $region14: #{tpu_custom_call.1} parent=1 // pred_check
      _
    $region15: #{tpu_custom_call.1} parent=1 // pred_check_branch
      %109 = sbr.rel (0) target = $region17
    $region16: #{tpu_custom_call.1} parent=1 // pred_region
      %111 = vsyncadd [#allocation3], 0
      %s112 = sshll.u32 [#allocation2], 4
      %s113 = int_to_ptr.vmem [resolvable:$true] %s112
      %s114 = sshll.u32 %s3, 4
      %s115 = int_to_ptr.hbm [resolvable:$true] %s114
      %120 = dma.vmem_to_hbm [thread:$0]  %s113, 1024, %s115, [#allocation3], 128, 128, 8
    $region17: #{tpu_custom_call.1} parent=1 // pred_fallthru
      _
    // Predicated region
    $region18: #{tpu_custom_call.1} parent=1 // pred_check
      _
    $region19: #{tpu_custom_call.1} parent=1 // pred_check_branch
      %122 = sbr.rel (0) target = $region21
    $region20: #{tpu_custom_call.1} parent=1 // pred_region
      %124 = dma.done [#allocation3], 1024
    $region21: #{tpu_custom_call.1} parent=1 // pred_fallthru
      _
    %125 = vsyncpa [#allocation3], 1

</llo_original>
